<compile_context>
chip_gen: v6e
topology: v6e:2x2x1
jax: 0.10.0
libtpu: 0.0.40
codegen_flags: <defaults>
</compile_context>

<pallas_src>
import functools

import jax
import jax.numpy as jnp
from jax.experimental import pallas as pl
from jax.experimental.pallas import tpu as pltpu

OBS_SIZE = 4      # CartPole-v1 observation_space.shape[0]
ACTION_SIZE = 2   # CartPole-v1 action_space.n
HIDDEN = 512
OUT_PAD = 128     # lane-dense padded logit width (real logits in lanes [:2])
TB_MAX = 256      # batch tile (rows per grid step)


def _round_up(x, m):
    return (x + m - 1) // m * m


def qnetwork_kernel(x_ref, w1_ref, b1_ref, w2_ref, b2_ref, w3_ref, b3_ref, o_ref):
    # Layer 1: Linear(4, 512) + ReLU.
    # K=4 would waste nearly a whole MXU pass, so use 4 VPU broadcast-FMAs
    # (different VLIW slot; keeps the MXU free for layers 2/3). All f32.
    x = x_ref[...]                      # (TB, 4)   f32
    w1 = w1_ref[...]                    # (4, 512)  f32
    h1 = b1_ref[...] + x[:, 0:1] * w1[0:1, :]
    for k in range(1, OBS_SIZE):
        h1 = h1 + x[:, k:k + 1] * w1[k:k + 1, :]
    h1 = jnp.maximum(h1, 0.0)

    # Layer 2: Linear(512, 512) + ReLU. bf16 MXU inputs, f32 accumulate;
    # bias-add / ReLU in f32 (v5e VPU has no bf16).
    h2 = jnp.dot(h1.astype(jnp.bfloat16), w2_ref[...],
                 preferred_element_type=jnp.float32)
    h2 = jnp.maximum(h2 + b2_ref[...], 0.0)

    # Layer 3: Linear(512, 2) zero-padded to 128 output lanes -> unmasked,
    # lane-dense output store.
    logits = jnp.dot(h2.astype(jnp.bfloat16), w3_ref[...],
                     preferred_element_type=jnp.float32)
    o_ref[...] = (logits + b3_ref[...]).astype(o_ref.dtype)


def pack_params(params):
    """Pack f32 PyTorch-shaped params into the kernel layout.

    w1 stays f32 (tiny, feeds the VPU path). w2/w3 go bf16 to halve weight HBM
    traffic; biases stay f32. w3/b3 are zero-padded to OUT_PAD lanes.
    """
    w1, b1, w2, b2, w3, b3 = params
    w3p = jnp.zeros((HIDDEN, OUT_PAD), jnp.float32).at[:, :ACTION_SIZE].set(w3)
    b3p = jnp.zeros((1, OUT_PAD), jnp.float32).at[:, :ACTION_SIZE].set(b3)
    return (w1.astype(jnp.float32), b1.astype(jnp.float32),
            w2.astype(jnp.bfloat16), b2.astype(jnp.float32),
            w3p.astype(jnp.bfloat16), b3p.astype(jnp.float32))


@functools.partial(jax.jit, static_argnames=("tb_max",))
def qnetwork_forward(x, params, *, tb_max=TB_MAX):
    """x: [B, OBS_SIZE] float32. Returns logits [B, ACTION_SIZE] float32."""
    w1, b1, w2b, b2, w3b, b3p = pack_params(params)

    B = x.shape[0]
    tb = min(tb_max, _round_up(B, 8))   # sublane-aligned batch tile
    Bp = _round_up(B, tb)               # pad ragged last tile with zero rows
    if Bp != B:
        x = jnp.pad(x, ((0, Bp - B), (0, 0)))
    grid = (Bp // tb,)

    resident = lambda i: (0, 0)         # weights/biases: DMA once, stay in VMEM

    cost = pl.CostEstimate(
        flops=2 * Bp * HIDDEN * (OBS_SIZE + HIDDEN + OUT_PAD),
        transcendentals=0,
        bytes_accessed=(w1.size * 4 + b1.size * 4 + w2b.size * 2 + b2.size * 4
                        + w3b.size * 2 + b3p.size * 4
                        + Bp * OBS_SIZE * 4 + Bp * OUT_PAD * 4),
    )

    out = pl.pallas_call(
        qnetwork_kernel,
        out_shape=jax.ShapeDtypeStruct((Bp, OUT_PAD), jnp.float32),
        grid=grid,
        in_specs=[
            pl.BlockSpec((tb, OBS_SIZE), lambda i: (i, 0)),   # x: tiled over batch
            pl.BlockSpec((OBS_SIZE, HIDDEN), resident),       # w1 (f32)
            pl.BlockSpec((1, HIDDEN), resident),              # b1 (f32)
            pl.BlockSpec((HIDDEN, HIDDEN), resident),         # w2 (bf16)
            pl.BlockSpec((1, HIDDEN), resident),              # b2 (f32)
            pl.BlockSpec((HIDDEN, OUT_PAD), resident),        # w3 (bf16, padded)
            pl.BlockSpec((1, OUT_PAD), resident),             # b3 (f32, padded)
        ],
        out_specs=pl.BlockSpec((tb, OUT_PAD), lambda i: (i, 0)),
        compiler_params=pltpu.CompilerParams(
            dimension_semantics=("parallel",),   # megacore-shard batch on v7x
            vmem_limit_bytes=48 * 1024 * 1024,
        ),
        cost_estimate=cost,
    )(x, w1, b1, w2b, b2, w3b, b3p)

    return out[:B, :ACTION_SIZE]


def init_params(key):
    """Deterministic init matching the PyTorch layer shapes (stored transposed)."""
    ks = jax.random.split(key, 6)

    def linear(kw, kb, fan_in, fan_out):
        # PyTorch default: U(-1/sqrt(fan_in), 1/sqrt(fan_in)) for weight and bias.
        bound = 1.0 / jnp.sqrt(jnp.float32(fan_in))
        w = jax.random.uniform(kw, (fan_in, fan_out), jnp.float32, -bound, bound)
        b = jax.random.uniform(kb, (1, fan_out), jnp.float32, -bound, bound)
        return w, b

    w1, b1 = linear(ks[0], ks[1], OBS_SIZE, HIDDEN)
    w2, b2 = linear(ks[2], ks[3], HIDDEN, HIDDEN)
    w3, b3 = linear(ks[4], ks[5], HIDDEN, ACTION_SIZE)
    return (w1, b1, w2, b2, w3, b3)


def reference_forward(x, params):
    """Pure-JAX reference mirroring the kernel's bf16-weight / f32-accumulate math."""
    w1, b1, w2, b2, w3, b3 = params
    h1 = b1 + x[:, 0:1] * w1[0:1, :]
    for k in range(1, OBS_SIZE):
        h1 = h1 + x[:, k:k + 1] * w1[k:k + 1, :]
    h1 = jnp.maximum(h1, 0.0)
    h2 = jnp.dot(h1.astype(jnp.bfloat16), w2.astype(jnp.bfloat16),
                 preferred_element_type=jnp.float32)
    h2 = jnp.maximum(h2 + b2, 0.0)
    logits = jnp.dot(h2.astype(jnp.bfloat16), w3.astype(jnp.bfloat16),
                     preferred_element_type=jnp.float32)
    return logits + b3


if __name__ == "__main__":
    key = jax.random.PRNGKey(0)
    pkey, xkey = jax.random.split(key)
    params = init_params(pkey)

    # Small acting-loop style batch.
    batch = 8
    x = jax.random.normal(xkey, (batch, OBS_SIZE), jnp.float32)
    logits = qnetwork_forward(x, params)
    jax.block_until_ready(logits)
    ref = reference_forward(x, params)
    assert logits.shape == (batch, ACTION_SIZE)
    assert jnp.allclose(logits, ref, atol=1e-2, rtol=1e-2), float(
        jnp.max(jnp.abs(logits - ref)))

    # Ragged, multi-tile replay-style batch to exercise the grid path.
    x_big = jax.random.normal(jax.random.PRNGKey(1), (300, OBS_SIZE), jnp.float32)
    logits_big = qnetwork_forward(x_big, params)
    jax.block_until_ready(logits_big)
    ref_big = reference_forward(x_big, params)
    assert logits_big.shape == (300, ACTION_SIZE)
    assert jnp.allclose(logits_big, ref_big, atol=1e-2, rtol=1e-2)

    print("KERNEL_OK")
</pallas_src>

<mosaic_0001>
module attributes {stable_mosaic.version = 11 : i64} {
  func.func @qnetwork_kernel(%arg0: i32, %arg1: memref<8x4xf32, #tpu.memory_space<vmem>>, %arg2: memref<4x512xf32, #tpu.memory_space<vmem>>, %arg3: memref<1x512xf32, #tpu.memory_space<vmem>>, %arg4: memref<512x512xbf16, #tpu.memory_space<vmem>>, %arg5: memref<1x512xf32, #tpu.memory_space<vmem>>, %arg6: memref<512x128xbf16, #tpu.memory_space<vmem>>, %arg7: memref<1x128xf32, #tpu.memory_space<vmem>>, %arg8: memref<8x128xf32, #tpu.memory_space<vmem>>) attributes {dimension_semantics = [#tpu.dimension_semantics<parallel>], iteration_bounds = array<i64: 1>, scalar_prefetch = 0 : i64, scratch_operands = 0 : i64, tpu.core_type = #tpu.core_type<tc>, window_params = [{transform_indices = @transform_0, window_bounds = array<i64: 8, 4>}, {pipeline_mode = #tpu.pipeline_mode<synchronous>, transform_indices = @transform_1, window_bounds = array<i64: 4, 512>}, {pipeline_mode = #tpu.pipeline_mode<synchronous>, transform_indices = @transform_2, window_bounds = array<i64: 1, 512>}, {pipeline_mode = #tpu.pipeline_mode<synchronous>, transform_indices = @transform_3, window_bounds = array<i64: 512, 512>}, {pipeline_mode = #tpu.pipeline_mode<synchronous>, transform_indices = @transform_4, window_bounds = array<i64: 1, 512>}, {pipeline_mode = #tpu.pipeline_mode<synchronous>, transform_indices = @transform_5, window_bounds = array<i64: 512, 128>}, {pipeline_mode = #tpu.pipeline_mode<synchronous>, transform_indices = @transform_6, window_bounds = array<i64: 1, 128>}, {transform_indices = @transform_7, window_bounds = array<i64: 8, 128>}]} {
    %c0 = arith.constant 0 : index
    %c0_0 = arith.constant 0 : index
    %0 = vector.load %arg1[%c0, %c0_0] : memref<8x4xf32, #tpu.memory_space<vmem>>, vector<8x4xf32>
    %c0_1 = arith.constant 0 : index
    %c0_2 = arith.constant 0 : index
    %1 = vector.load %arg2[%c0_1, %c0_2] : memref<4x512xf32, #tpu.memory_space<vmem>>, vector<4x512xf32>
    %c0_3 = arith.constant 0 : index
    %c0_4 = arith.constant 0 : index
    %2 = vector.load %arg3[%c0_3, %c0_4] : memref<1x512xf32, #tpu.memory_space<vmem>>, vector<1x512xf32>
    %3 = vector.extract_strided_slice %0 {offsets = [0, 0], sizes = [8, 1], strides = [1, 1]} : vector<8x4xf32> to vector<8x1xf32>
    %4 = vector.extract_strided_slice %1 {offsets = [0, 0], sizes = [1, 512], strides = [1, 1]} : vector<4x512xf32> to vector<1x512xf32>
    %5 = vector.broadcast %3 : vector<8x1xf32> to vector<8x512xf32>
    %6 = vector.broadcast %4 : vector<1x512xf32> to vector<8x512xf32>
    %7 = arith.mulf %5, %6 : vector<8x512xf32>
    %8 = vector.broadcast %2 : vector<1x512xf32> to vector<8x512xf32>
    %9 = arith.addf %8, %7 : vector<8x512xf32>
    %10 = vector.extract_strided_slice %0 {offsets = [0, 1], sizes = [8, 1], strides = [1, 1]} : vector<8x4xf32> to vector<8x1xf32>
    %11 = vector.extract_strided_slice %1 {offsets = [1, 0], sizes = [1, 512], strides = [1, 1]} : vector<4x512xf32> to vector<1x512xf32>
    %12 = vector.broadcast %10 : vector<8x1xf32> to vector<8x512xf32>
    %13 = vector.broadcast %11 : vector<1x512xf32> to vector<8x512xf32>
    %14 = arith.mulf %12, %13 : vector<8x512xf32>
    %15 = arith.addf %9, %14 : vector<8x512xf32>
    %16 = vector.extract_strided_slice %0 {offsets = [0, 2], sizes = [8, 1], strides = [1, 1]} : vector<8x4xf32> to vector<8x1xf32>
    %17 = vector.extract_strided_slice %1 {offsets = [2, 0], sizes = [1, 512], strides = [1, 1]} : vector<4x512xf32> to vector<1x512xf32>
    %18 = vector.broadcast %16 : vector<8x1xf32> to vector<8x512xf32>
    %19 = vector.broadcast %17 : vector<1x512xf32> to vector<8x512xf32>
    %20 = arith.mulf %18, %19 : vector<8x512xf32>
    %21 = arith.addf %15, %20 : vector<8x512xf32>
    %22 = vector.extract_strided_slice %0 {offsets = [0, 3], sizes = [8, 1], strides = [1, 1]} : vector<8x4xf32> to vector<8x1xf32>
    %23 = vector.extract_strided_slice %1 {offsets = [3, 0], sizes = [1, 512], strides = [1, 1]} : vector<4x512xf32> to vector<1x512xf32>
    %24 = vector.broadcast %22 : vector<8x1xf32> to vector<8x512xf32>
    %25 = vector.broadcast %23 : vector<1x512xf32> to vector<8x512xf32>
    %26 = arith.mulf %24, %25 : vector<8x512xf32>
    %27 = arith.addf %21, %26 : vector<8x512xf32>
    %cst = arith.constant 0.000000e+00 : f32
    %28 = vector.broadcast %cst : f32 to vector<8x512xf32>
    %29 = arith.maximumf %27, %28 : vector<8x512xf32>
    %30 = arith.truncf %29 : vector<8x512xf32> to vector<8x512xbf16>
    %c0_5 = arith.constant 0 : index
    %c0_6 = arith.constant 0 : index
    %31 = vector.load %arg4[%c0_5, %c0_6] : memref<512x512xbf16, #tpu.memory_space<vmem>>, vector<512x512xbf16>
    %cst_7 = arith.constant dense<0.000000e+00> : vector<8x512xf32>
    %32 = tpu.matmul %30, %31, %cst_7 {dimension_numbers = #tpu.dot_dimension_numbers<[1], [0], [0], [1], [0, 0, 1, 1], [], []>} : vector<8x512xbf16>, vector<512x512xbf16>, vector<8x512xf32> -> vector<8x512xf32>
    %c0_8 = arith.constant 0 : index
    %c0_9 = arith.constant 0 : index
    %33 = vector.load %arg5[%c0_8, %c0_9] : memref<1x512xf32, #tpu.memory_space<vmem>>, vector<1x512xf32>
    %34 = vector.broadcast %33 : vector<1x512xf32> to vector<8x512xf32>
    %35 = arith.addf %32, %34 : vector<8x512xf32>
    %cst_10 = arith.constant 0.000000e+00 : f32
    %36 = vector.broadcast %cst_10 : f32 to vector<8x512xf32>
    %37 = arith.maximumf %35, %36 : vector<8x512xf32>
    %38 = arith.truncf %37 : vector<8x512xf32> to vector<8x512xbf16>
    %c0_11 = arith.constant 0 : index
    %c0_12 = arith.constant 0 : index
    %39 = vector.load %arg6[%c0_11, %c0_12] : memref<512x128xbf16, #tpu.memory_space<vmem>>, vector<512x128xbf16>
    %cst_13 = arith.constant dense<0.000000e+00> : vector<8x128xf32>
    %40 = tpu.matmul %38, %39, %cst_13 {dimension_numbers = #tpu.dot_dimension_numbers<[1], [0], [0], [1], [0, 0, 1, 1], [], []>} : vector<8x512xbf16>, vector<512x128xbf16>, vector<8x128xf32> -> vector<8x128xf32>
    %c0_14 = arith.constant 0 : index
    %c0_15 = arith.constant 0 : index
    %41 = vector.load %arg7[%c0_14, %c0_15] : memref<1x128xf32, #tpu.memory_space<vmem>>, vector<1x128xf32>
    %42 = vector.broadcast %41 : vector<1x128xf32> to vector<8x128xf32>
    %43 = arith.addf %40, %42 : vector<8x128xf32>
    %c0_16 = arith.constant 0 : index
    %c0_17 = arith.constant 0 : index
    %44 = vector.load %arg8[%c0_16, %c0_17] : memref<8x128xf32, #tpu.memory_space<vmem>>, vector<8x128xf32>
    tpu.vector_store %arg8[%c0_16, %c0_17], %43 {strides = array<i32>} : memref<8x128xf32, #tpu.memory_space<vmem>>, vector<8x128xf32>,
    return
  }
  func.func @transform_0(%arg0: i32) -> (i32, i32) {
    %c0_i32 = arith.constant 0 : i32
    %c0_i32_0 = arith.constant 0 : i32
    return %arg0, %c0_i32 : i32, i32
  }
  func.func @transform_1(%arg0: i32) -> (i32, i32) {
    %c0_i32 = arith.constant 0 : i32
    %c0_i32_0 = arith.constant 0 : i32
    %c0_i32_1 = arith.constant 0 : i32
    return %c0_i32, %c0_i32_0 : i32, i32
  }
  func.func @transform_2(%arg0: i32) -> (i32, i32) {
    %c0_i32 = arith.constant 0 : i32
    %c0_i32_0 = arith.constant 0 : i32
    %c0_i32_1 = arith.constant 0 : i32
    return %c0_i32, %c0_i32_0 : i32, i32
  }
  func.func @transform_3(%arg0: i32) -> (i32, i32) {
    %c0_i32 = arith.constant 0 : i32
    %c0_i32_0 = arith.constant 0 : i32
    %c0_i32_1 = arith.constant 0 : i32
    return %c0_i32, %c0_i32_0 : i32, i32
  }
  func.func @transform_4(%arg0: i32) -> (i32, i32) {
    %c0_i32 = arith.constant 0 : i32
    %c0_i32_0 = arith.constant 0 : i32
    %c0_i32_1 = arith.constant 0 : i32
    return %c0_i32, %c0_i32_0 : i32, i32
  }
  func.func @transform_5(%arg0: i32) -> (i32, i32) {
    %c0_i32 = arith.constant 0 : i32
    %c0_i32_0 = arith.constant 0 : i32
    %c0_i32_1 = arith.constant 0 : i32
    return %c0_i32, %c0_i32_0 : i32, i32
  }
  func.func @transform_6(%arg0: i32) -> (i32, i32) {
    %c0_i32 = arith.constant 0 : i32
    %c0_i32_0 = arith.constant 0 : i32
    %c0_i32_1 = arith.constant 0 : i32
    return %c0_i32, %c0_i32_0 : i32, i32
  }
  func.func @transform_7(%arg0: i32) -> (i32, i32) {
    %c0_i32 = arith.constant 0 : i32
    %c0_i32_0 = arith.constant 0 : i32
    return %arg0, %c0_i32 : i32, i32
  }
}

</mosaic_0001>

<llo_original>
// kernel: qnetwork_forward.1
$region0: #{qnetwork_forward.1}
  #allocation0 [shape = 'u32[]', space=smem, size = 0x4, offset = 0x4, fixed_abs, tag = 'smem constant byte address 0x4 - core index']
  #allocation1 [shape = 'u32[144,128]{1,0:T(1,128)}', space=vmem, size = 0x12000, scoped, tag = 'internal scratch']
  %s0 = inlined_call_operand.vmem [shape: f32[8,4], index: 0, kind: input, shape index: {}]
  %s1 = inlined_call_operand.vmem [shape: f32[4,512], index: 1, kind: input, shape index: {}]
  %s2 = inlined_call_operand.vmem [shape: f32[1,512], index: 2, kind: input, shape index: {}]
  %s3 = inlined_call_operand.vmem [shape: bf16[512,512], index: 3, kind: input, shape index: {}]
  %s4 = inlined_call_operand.vmem [shape: f32[1,512], index: 4, kind: input, shape index: {}]
  %s5 = inlined_call_operand.vmem [shape: bf16[512,128], index: 5, kind: input, shape index: {}]
  %s6 = inlined_call_operand.vmem [shape: f32[1,128], index: 6, kind: input, shape index: {}]
  %s7 = inlined_call_operand.vmem [shape: f32[8,128], index: 7, kind: output, shape index: {}]
  %s8 = sld [smem:[#allocation0]]
  $region38: #{qnetwork_forward.1} parent=0
    _
  %s10 = ssub.s32 1, %s8
  %s11 = scalar_select 0, %s10, %s8
  // Predicated region
  $region2: #{qnetwork_forward.1} parent=0 // pred_check
    _
  $region3: #{qnetwork_forward.1} parent=0 // pred_check_branch
    %13 = sbr.rel (0) target = $region5
  $region4: #{qnetwork_forward.1} parent=0 // pred_region
    _
  $region5: #{qnetwork_forward.1} parent=0 // pred_fallthru
    _
  // Predicated region
  $region6: #{qnetwork_forward.1} parent=0 // pred_check
    _
  $region7: #{qnetwork_forward.1} parent=0 // pred_check_branch
    %15 = sbr.rel (0) target = $region9
  $region8: #{qnetwork_forward.1} parent=0 // pred_region
    _
  $region9: #{qnetwork_forward.1} parent=0 // pred_fallthru
    _
  // Predicated region
  $region10: #{qnetwork_forward.1} parent=0 // pred_check
    _
  $region11: #{qnetwork_forward.1} parent=0 // pred_check_branch
    %17 = sbr.rel (0) target = $region13
  $region12: #{qnetwork_forward.1} parent=0 // pred_region
    _
  $region13: #{qnetwork_forward.1} parent=0 // pred_fallthru
    _
  // Predicated region
  $region14: #{qnetwork_forward.1} parent=0 // pred_check
    _
  $region15: #{qnetwork_forward.1} parent=0 // pred_check_branch
    %19 = sbr.rel (0) target = $region17
  $region16: #{qnetwork_forward.1} parent=0 // pred_region
    _
  $region17: #{qnetwork_forward.1} parent=0 // pred_fallthru
    _
  // Predicated region
  $region18: #{qnetwork_forward.1} parent=0 // pred_check
    _
  $region19: #{qnetwork_forward.1} parent=0 // pred_check_branch
    %21 = sbr.rel (0) target = $region21
  $region20: #{qnetwork_forward.1} parent=0 // pred_region
    _
  $region21: #{qnetwork_forward.1} parent=0 // pred_fallthru
    _
  // Predicated region
  $region22: #{qnetwork_forward.1} parent=0 // pred_check
    _
  $region23: #{qnetwork_forward.1} parent=0 // pred_check_branch
    %23 = sbr.rel (0) target = $region25
  $region24: #{qnetwork_forward.1} parent=0 // pred_region
    _
  $region25: #{qnetwork_forward.1} parent=0 // pred_fallthru
    _
  // Predicated region
  $region26: #{qnetwork_forward.1} parent=0 // pred_check
    _
  $region27: #{qnetwork_forward.1} parent=0 // pred_check_branch
    %25 = sbr.rel (0) target = $region29
  $region28: #{qnetwork_forward.1} parent=0 // pred_region
    _
  $region29: #{qnetwork_forward.1} parent=0 // pred_fallthru
    _
  %v27 = vld [vmem:[%s0] sm:$0xff]
  %v28 = vld [vmem:[%s1] sm:$0xff]
  %v29 = vld [vmem:[%s1 + $0x8] sm:$0xff]
  %v30 = vld [vmem:[%s2] sm:$0xf]
  %32 = vset.pattern.permute.xlu0 0
  %33 = vperm.xlu0 %32, %v27
  %v34 = vpop.permute.xlu0 %33
  %v38 = vlaneseq
  %v39 = vshrl.u32 %v38, 7
  %v40 = vsub.s32 0, %v39
  %v41 = vrot.slane %v28, %v40
  %v42 = vlaneseq
  %v43 = vshrl.u32 %v42, 7
  %v44 = vsub.s32 4, %v43
  %v45 = vrot.slane %v28, %v44
  %v46 = vlaneseq
  %v47 = vshrl.u32 %v46, 7
  %v48 = vsub.s32 0, %v47
  %v49 = vrot.slane %v29, %v48
  %v50 = vlaneseq
  %v51 = vshrl.u32 %v50, 7
  %v52 = vsub.s32 4, %v51
  %v53 = vrot.slane %v29, %v52
  %v58 = vlaneseq
  %v59 = vshrl.u32 %v58, 7
  %v60 = vsub.s32 0, %v59
  %v61 = vrot.slane %v41, %v60
  %v62 = vlaneseq
  %v63 = vshrl.u32 %v62, 7
  %v64 = vsub.s32 0, %v63
  %v65 = vrot.slane %v45, %v64
  %v66 = vlaneseq
  %v67 = vshrl.u32 %v66, 7
  %v68 = vsub.s32 0, %v67
  %v69 = vrot.slane %v49, %v68
  %v70 = vlaneseq
  %v71 = vshrl.u32 %v70, 7
  %v72 = vsub.s32 0, %v71
  %v73 = vrot.slane %v53, %v72
  %v74 = vmul.f32 %v34, %v61
  %v75 = vmul.f32 %v34, %v65
  %v76 = vmul.f32 %v34, %v69
  %v77 = vmul.f32 %v34, %v73
  %v79 = vlaneseq
  %v80 = vshrl.u32 %v79, 7
  %v81 = vsub.s32 0, %v80
  %v82 = vrot.slane %v30, %v81
  %v83 = vlaneseq
  %v84 = vshrl.u32 %v83, 7
  %v85 = vsub.s32 1, %v84
  %v86 = vrot.slane %v30, %v85
  %v87 = vlaneseq
  %v88 = vshrl.u32 %v87, 7
  %v89 = vsub.s32 2, %v88
  %v90 = vrot.slane %v30, %v89
  %v91 = vlaneseq
  %v92 = vshrl.u32 %v91, 7
  %v93 = vsub.s32 3, %v92
  %v94 = vrot.slane %v30, %v93
  %v99 = vadd.f32 %v82, %v74
  %v100 = vadd.f32 %v86, %v75
  %v101 = vadd.f32 %v90, %v76
  %v102 = vadd.f32 %v94, %v77
  %103 = vset.pattern.permute.xlu0 1
  %104 = vperm.xlu0 %103, %v27
  %v105 = vpop.permute.xlu0 %104
  %v107 = vlaneseq
  %v108 = vshrl.u32 %v107, 7
  %v109 = vsub.s32 1, %v108
  %v110 = vrot.slane %v28, %v109
  %v111 = vlaneseq
  %v112 = vshrl.u32 %v111, 7
  %v113 = vsub.s32 5, %v112
  %v114 = vrot.slane %v28, %v113
  %v115 = vlaneseq
  %v116 = vshrl.u32 %v115, 7
  %v117 = vsub.s32 1, %v116
  %v118 = vrot.slane %v29, %v117
  %v119 = vlaneseq
  %v120 = vshrl.u32 %v119, 7
  %v121 = vsub.s32 5, %v120
  %v122 = vrot.slane %v29, %v121
  %v127 = vlaneseq
  %v128 = vshrl.u32 %v127, 7
  %v129 = vsub.s32 1, %v128
  %v130 = vrot.slane %v110, %v129
  %v131 = vlaneseq
  %v132 = vshrl.u32 %v131, 7
  %v133 = vsub.s32 1, %v132
  %v134 = vrot.slane %v114, %v133
  %v135 = vlaneseq
  %v136 = vshrl.u32 %v135, 7
  %v137 = vsub.s32 1, %v136
  %v138 = vrot.slane %v118, %v137
  %v139 = vlaneseq
  %v140 = vshrl.u32 %v139, 7
  %v141 = vsub.s32 1, %v140
  %v142 = vrot.slane %v122, %v141
  %v143 = vmul.f32 %v105, %v130
  %v144 = vmul.f32 %v105, %v134
  %v145 = vmul.f32 %v105, %v138
  %v146 = vmul.f32 %v105, %v142
  %v147 = vadd.f32 %v99, %v143
  %v148 = vadd.f32 %v100, %v144
  %v149 = vadd.f32 %v101, %v145
  %v150 = vadd.f32 %v102, %v146
  %151 = vset.pattern.permute.xlu0 2
  %152 = vperm.xlu0 %151, %v27
  %v153 = vpop.permute.xlu0 %152
  %v155 = vlaneseq
  %v156 = vshrl.u32 %v155, 7
  %v157 = vsub.s32 2, %v156
  %v158 = vrot.slane %v28, %v157
  %v159 = vlaneseq
  %v160 = vshrl.u32 %v159, 7
  %v161 = vsub.s32 6, %v160
  %v162 = vrot.slane %v28, %v161
  %v163 = vlaneseq
  %v164 = vshrl.u32 %v163, 7
  %v165 = vsub.s32 2, %v164
  %v166 = vrot.slane %v29, %v165
  %v167 = vlaneseq
  %v168 = vshrl.u32 %v167, 7
  %v169 = vsub.s32 6, %v168
  %v170 = vrot.slane %v29, %v169
  %v175 = vlaneseq
  %v176 = vshrl.u32 %v175, 7
  %v177 = vsub.s32 2, %v176
  %v178 = vrot.slane %v158, %v177
  %v179 = vlaneseq
  %v180 = vshrl.u32 %v179, 7
  %v181 = vsub.s32 2, %v180
  %v182 = vrot.slane %v162, %v181
  %v183 = vlaneseq
  %v184 = vshrl.u32 %v183, 7
  %v185 = vsub.s32 2, %v184
  %v186 = vrot.slane %v166, %v185
  %v187 = vlaneseq
  %v188 = vshrl.u32 %v187, 7
  %v189 = vsub.s32 2, %v188
  %v190 = vrot.slane %v170, %v189
  %v191 = vmul.f32 %v153, %v178
  %v192 = vmul.f32 %v153, %v182
  %v193 = vmul.f32 %v153, %v186
  %v194 = vmul.f32 %v153, %v190
  %v195 = vadd.f32 %v147, %v191
  %v196 = vadd.f32 %v148, %v192
  %v197 = vadd.f32 %v149, %v193
  %v198 = vadd.f32 %v150, %v194
  %199 = vset.pattern.permute.xlu0 3
  %200 = vperm.xlu0 %199, %v27
  %v201 = vpop.permute.xlu0 %200
  %v203 = vlaneseq
  %v204 = vshrl.u32 %v203, 7
  %v205 = vsub.s32 3, %v204
  %v206 = vrot.slane %v28, %v205
  %v207 = vlaneseq
  %v208 = vshrl.u32 %v207, 7
  %v209 = vsub.s32 7, %v208
  %v210 = vrot.slane %v28, %v209
  %v211 = vlaneseq
  %v212 = vshrl.u32 %v211, 7
  %v213 = vsub.s32 3, %v212
  %v214 = vrot.slane %v29, %v213
  %v215 = vlaneseq
  %v216 = vshrl.u32 %v215, 7
  %v217 = vsub.s32 7, %v216
  %v218 = vrot.slane %v29, %v217
  %v223 = vlaneseq
  %v224 = vshrl.u32 %v223, 7
  %v225 = vsub.s32 3, %v224
  %v226 = vrot.slane %v206, %v225
  %v227 = vlaneseq
  %v228 = vshrl.u32 %v227, 7
  %v229 = vsub.s32 3, %v228
  %v230 = vrot.slane %v210, %v229
  %v231 = vlaneseq
  %v232 = vshrl.u32 %v231, 7
  %v233 = vsub.s32 3, %v232
  %v234 = vrot.slane %v214, %v233
  %v235 = vlaneseq
  %v236 = vshrl.u32 %v235, 7
  %v237 = vsub.s32 3, %v236
  %v238 = vrot.slane %v218, %v237
  %v239 = vmul.f32 %v201, %v226
  %v240 = vmul.f32 %v201, %v230
  %v241 = vmul.f32 %v201, %v234
  %v242 = vmul.f32 %v201, %v238
  %v243 = vadd.f32 %v195, %v239
  %v244 = vadd.f32 %v196, %v240
  %v245 = vadd.f32 %v197, %v241
  %v246 = vadd.f32 %v198, %v242
  %v247 = vmax.f32 %v243, 0.0
  %v248 = vmax.f32 %v244, 0.0
  %v249 = vmax.f32 %v245, 0.0
  %v250 = vmax.f32 %v246, 0.0
  %v251 = vpack.c.bf16 %v247, %v247
  %v252 = vpack.c.bf16 %v248, %v248
  %v253 = vpack.c.bf16 %v249, %v249
  %v254 = vpack.c.bf16 %v250, %v250
  %v255 = vld [vmem:[%s3] sm:$0xff]
  %v256 = vld [vmem:[%s3 + $0x8] sm:$0xff]
  %v257 = vld [vmem:[%s3 + $0x10] sm:$0xff]
  %v258 = vld [vmem:[%s3 + $0x18] sm:$0xff]
  %v259 = vld [vmem:[%s3 + $0x20] sm:$0xff]
  %v260 = vld [vmem:[%s3 + $0x28] sm:$0xff]
  %v261 = vld [vmem:[%s3 + $0x30] sm:$0xff]
  %v262 = vld [vmem:[%s3 + $0x38] sm:$0xff]
  %v263 = vld [vmem:[%s3 + $0x40] sm:$0xff]
  %v264 = vld [vmem:[%s3 + $0x48] sm:$0xff]
  %v265 = vld [vmem:[%s3 + $0x50] sm:$0xff]
  %v266 = vld [vmem:[%s3 + $0x58] sm:$0xff]
  %v267 = vld [vmem:[%s3 + $0x60] sm:$0xff]
  %v268 = vld [vmem:[%s3 + $0x68] sm:$0xff]
  %v269 = vld [vmem:[%s3 + $0x70] sm:$0xff]
  %v270 = vld [vmem:[%s3 + $0x78] sm:$0xff]
  %v271 = vld [vmem:[%s3 + $0x80] sm:$0xff]
  %v272 = vld [vmem:[%s3 + $0x88] sm:$0xff]
  %v273 = vld [vmem:[%s3 + $0x90] sm:$0xff]
  %v274 = vld [vmem:[%s3 + $0x98] sm:$0xff]
  %v275 = vld [vmem:[%s3 + $0xa0] sm:$0xff]
  %v276 = vld [vmem:[%s3 + $0xa8] sm:$0xff]
  %v277 = vld [vmem:[%s3 + $0xb0] sm:$0xff]
  %v278 = vld [vmem:[%s3 + $0xb8] sm:$0xff]
  %v279 = vld [vmem:[%s3 + $0xc0] sm:$0xff]
  %v280 = vld [vmem:[%s3 + $0xc8] sm:$0xff]
  %v281 = vld [vmem:[%s3 + $0xd0] sm:$0xff]
  %v282 = vld [vmem:[%s3 + $0xd8] sm:$0xff]
  %v283 = vld [vmem:[%s3 + $0xe0] sm:$0xff]
  %v284 = vld [vmem:[%s3 + $0xe8] sm:$0xff]
  %v285 = vld [vmem:[%s3 + $0xf0] sm:$0xff]
  %v286 = vld [vmem:[%s3 + $0xf8] sm:$0xff]
  %v287 = vld [vmem:[%s3 + $0x100] sm:$0xff]
  %v288 = vld [vmem:[%s3 + $0x108] sm:$0xff]
  %v289 = vld [vmem:[%s3 + $0x110] sm:$0xff]
  %v290 = vld [vmem:[%s3 + $0x118] sm:$0xff]
  %v291 = vld [vmem:[%s3 + $0x120] sm:$0xff]
  %v292 = vld [vmem:[%s3 + $0x128] sm:$0xff]
  %v293 = vld [vmem:[%s3 + $0x130] sm:$0xff]
  %v294 = vld [vmem:[%s3 + $0x138] sm:$0xff]
  %v295 = vld [vmem:[%s3 + $0x140] sm:$0xff]
  %v296 = vld [vmem:[%s3 + $0x148] sm:$0xff]
  %v297 = vld [vmem:[%s3 + $0x150] sm:$0xff]
  %v298 = vld [vmem:[%s3 + $0x158] sm:$0xff]
  %v299 = vld [vmem:[%s3 + $0x160] sm:$0xff]
  %v300 = vld [vmem:[%s3 + $0x168] sm:$0xff]
  %v301 = vld [vmem:[%s3 + $0x170] sm:$0xff]
  %v302 = vld [vmem:[%s3 + $0x178] sm:$0xff]
  %v303 = vld [vmem:[%s3 + $0x180] sm:$0xff]
  %v304 = vld [vmem:[%s3 + $0x188] sm:$0xff]
  %v305 = vld [vmem:[%s3 + $0x190] sm:$0xff]
  %v306 = vld [vmem:[%s3 + $0x198] sm:$0xff]
  %v307 = vld [vmem:[%s3 + $0x1a0] sm:$0xff]
  %v308 = vld [vmem:[%s3 + $0x1a8] sm:$0xff]
  %v309 = vld [vmem:[%s3 + $0x1b0] sm:$0xff]
  %v310 = vld [vmem:[%s3 + $0x1b8] sm:$0xff]
  %v311 = vld [vmem:[%s3 + $0x1c0] sm:$0xff]
  %v312 = vld [vmem:[%s3 + $0x1c8] sm:$0xff]
  %v313 = vld [vmem:[%s3 + $0x1d0] sm:$0xff]
  %v314 = vld [vmem:[%s3 + $0x1d8] sm:$0xff]
  %v315 = vld [vmem:[%s3 + $0x1e0] sm:$0xff]
  %v316 = vld [vmem:[%s3 + $0x1e8] sm:$0xff]
  %v317 = vld [vmem:[%s3 + $0x1f0] sm:$0xff]
  %v318 = vld [vmem:[%s3 + $0x1f8] sm:$0xff]
  %v319 = vld [vmem:[%s3 + $0x200] sm:$0xff]
  %v320 = vld [vmem:[%s3 + $0x208] sm:$0xff]
  %v321 = vld [vmem:[%s3 + $0x210] sm:$0xff]
  %v322 = vld [vmem:[%s3 + $0x218] sm:$0xff]
  %v323 = vld [vmem:[%s3 + $0x220] sm:$0xff]
  %v324 = vld [vmem:[%s3 + $0x228] sm:$0xff]
  %v325 = vld [vmem:[%s3 + $0x230] sm:$0xff]
  %v326 = vld [vmem:[%s3 + $0x238] sm:$0xff]
  %v327 = vld [vmem:[%s3 + $0x240] sm:$0xff]
  %v328 = vld [vmem:[%s3 + $0x248] sm:$0xff]
  %v329 = vld [vmem:[%s3 + $0x250] sm:$0xff]
  %v330 = vld [vmem:[%s3 + $0x258] sm:$0xff]
  %v331 = vld [vmem:[%s3 + $0x260] sm:$0xff]
  %v332 = vld [vmem:[%s3 + $0x268] sm:$0xff]
  %v333 = vld [vmem:[%s3 + $0x270] sm:$0xff]
  %v334 = vld [vmem:[%s3 + $0x278] sm:$0xff]
  %v335 = vld [vmem:[%s3 + $0x280] sm:$0xff]
  %v336 = vld [vmem:[%s3 + $0x288] sm:$0xff]
  %v337 = vld [vmem:[%s3 + $0x290] sm:$0xff]
  %v338 = vld [vmem:[%s3 + $0x298] sm:$0xff]
  %v339 = vld [vmem:[%s3 + $0x2a0] sm:$0xff]
  %v340 = vld [vmem:[%s3 + $0x2a8] sm:$0xff]
  %v341 = vld [vmem:[%s3 + $0x2b0] sm:$0xff]
  %v342 = vld [vmem:[%s3 + $0x2b8] sm:$0xff]
  %v343 = vld [vmem:[%s3 + $0x2c0] sm:$0xff]
  %v344 = vld [vmem:[%s3 + $0x2c8] sm:$0xff]
  %v345 = vld [vmem:[%s3 + $0x2d0] sm:$0xff]
  %v346 = vld [vmem:[%s3 + $0x2d8] sm:$0xff]
  %v347 = vld [vmem:[%s3 + $0x2e0] sm:$0xff]
  %v348 = vld [vmem:[%s3 + $0x2e8] sm:$0xff]
  %v349 = vld [vmem:[%s3 + $0x2f0] sm:$0xff]
  %v350 = vld [vmem:[%s3 + $0x2f8] sm:$0xff]
  %v351 = vld [vmem:[%s3 + $0x300] sm:$0xff]
  %v352 = vld [vmem:[%s3 + $0x308] sm:$0xff]
  %v353 = vld [vmem:[%s3 + $0x310] sm:$0xff]
  %v354 = vld [vmem:[%s3 + $0x318] sm:$0xff]
  %v355 = vld [vmem:[%s3 + $0x320] sm:$0xff]
  %v356 = vld [vmem:[%s3 + $0x328] sm:$0xff]
  %v357 = vld [vmem:[%s3 + $0x330] sm:$0xff]
  %v358 = vld [vmem:[%s3 + $0x338] sm:$0xff]
  %v359 = vld [vmem:[%s3 + $0x340] sm:$0xff]
  %v360 = vld [vmem:[%s3 + $0x348] sm:$0xff]
  %v361 = vld [vmem:[%s3 + $0x350] sm:$0xff]
  %v362 = vld [vmem:[%s3 + $0x358] sm:$0xff]
  %v363 = vld [vmem:[%s3 + $0x360] sm:$0xff]
  %v364 = vld [vmem:[%s3 + $0x368] sm:$0xff]
  %v365 = vld [vmem:[%s3 + $0x370] sm:$0xff]
  %v366 = vld [vmem:[%s3 + $0x378] sm:$0xff]
  %v367 = vld [vmem:[%s3 + $0x380] sm:$0xff]
  %v368 = vld [vmem:[%s3 + $0x388] sm:$0xff]
  %v369 = vld [vmem:[%s3 + $0x390] sm:$0xff]
  %v370 = vld [vmem:[%s3 + $0x398] sm:$0xff]
  %v371 = vld [vmem:[%s3 + $0x3a0] sm:$0xff]
  %v372 = vld [vmem:[%s3 + $0x3a8] sm:$0xff]
  %v373 = vld [vmem:[%s3 + $0x3b0] sm:$0xff]
  %v374 = vld [vmem:[%s3 + $0x3b8] sm:$0xff]
  %v375 = vld [vmem:[%s3 + $0x3c0] sm:$0xff]
  %v376 = vld [vmem:[%s3 + $0x3c8] sm:$0xff]
  %v377 = vld [vmem:[%s3 + $0x3d0] sm:$0xff]
  %v378 = vld [vmem:[%s3 + $0x3d8] sm:$0xff]
  %v379 = vld [vmem:[%s3 + $0x3e0] sm:$0xff]
  %v380 = vld [vmem:[%s3 + $0x3e8] sm:$0xff]
  %v381 = vld [vmem:[%s3 + $0x3f0] sm:$0xff]
  %v382 = vld [vmem:[%s3 + $0x3f8] sm:$0xff]
  %v383 = vld [vmem:[%s4] sm:$0xf]
  %v385 = vlaneseq
  %v386 = vshrl.u32 %v385, 7
  %v387 = vsub.s32 0, %v386
  %v388 = vrot.slane %v383, %v387
  %v389 = vlaneseq
  %v390 = vshrl.u32 %v389, 7
  %v391 = vsub.s32 1, %v390
  %v392 = vrot.slane %v383, %v391
  %v393 = vlaneseq
  %v394 = vshrl.u32 %v393, 7
  %v395 = vsub.s32 2, %v394
  %v396 = vrot.slane %v383, %v395
  %v397 = vlaneseq
  %v398 = vshrl.u32 %v397, 7
  %v399 = vsub.s32 3, %v398
  %v400 = vrot.slane %v383, %v399
  %v533 = vunpack.c.l.b16 %v255
  %v534 = vunpack.c.h.b16 %v255
  %v535 = vunpack.c.l.b16 %v256
  %v536 = vunpack.c.h.b16 %v256
  %v537 = vunpack.c.l.b16 %v257
  %v538 = vunpack.c.h.b16 %v257
  %v539 = vunpack.c.l.b16 %v258
  %v540 = vunpack.c.h.b16 %v258
  %v541 = vunpack.c.l.b16 %v259
  %v542 = vunpack.c.h.b16 %v259
  %v543 = vunpack.c.l.b16 %v260
  %v544 = vunpack.c.h.b16 %v260
  %v545 = vunpack.c.l.b16 %v261
  %v546 = vunpack.c.h.b16 %v261
  %v547 = vunpack.c.l.b16 %v262
  %v548 = vunpack.c.h.b16 %v262
  %v549 = vunpack.c.l.b16 %v263
  %v550 = vunpack.c.h.b16 %v263
  %v551 = vunpack.c.l.b16 %v264
  %v552 = vunpack.c.h.b16 %v264
  %v553 = vunpack.c.l.b16 %v265
  %v554 = vunpack.c.h.b16 %v265
  %v555 = vunpack.c.l.b16 %v266
  %v556 = vunpack.c.h.b16 %v266
  %v557 = vunpack.c.l.b16 %v267
  %v558 = vunpack.c.h.b16 %v267
  %v559 = vunpack.c.l.b16 %v268
  %v560 = vunpack.c.h.b16 %v268
  %v561 = vunpack.c.l.b16 %v269
  %v562 = vunpack.c.h.b16 %v269
  %v563 = vunpack.c.l.b16 %v270
  %v564 = vunpack.c.h.b16 %v270
  %v565 = vunpack.c.l.b16 %v271
  %v566 = vunpack.c.h.b16 %v271
  %v567 = vunpack.c.l.b16 %v272
  %v568 = vunpack.c.h.b16 %v272
  %v569 = vunpack.c.l.b16 %v273
  %v570 = vunpack.c.h.b16 %v273
  %v571 = vunpack.c.l.b16 %v274
  %v572 = vunpack.c.h.b16 %v274
  %v573 = vunpack.c.l.b16 %v275
  %v574 = vunpack.c.h.b16 %v275
  %v575 = vunpack.c.l.b16 %v276
  %v576 = vunpack.c.h.b16 %v276
  %v577 = vunpack.c.l.b16 %v277
  %v578 = vunpack.c.h.b16 %v277
  %v579 = vunpack.c.l.b16 %v278
  %v580 = vunpack.c.h.b16 %v278
  %v581 = vunpack.c.l.b16 %v279
  %v582 = vunpack.c.h.b16 %v279
  %v583 = vunpack.c.l.b16 %v280
  %v584 = vunpack.c.h.b16 %v280
  %v585 = vunpack.c.l.b16 %v281
  %v586 = vunpack.c.h.b16 %v281
  %v587 = vunpack.c.l.b16 %v282
  %v588 = vunpack.c.h.b16 %v282
  %v589 = vunpack.c.l.b16 %v283
  %v590 = vunpack.c.h.b16 %v283
  %v591 = vunpack.c.l.b16 %v284
  %v592 = vunpack.c.h.b16 %v284
  %v593 = vunpack.c.l.b16 %v285
  %v594 = vunpack.c.h.b16 %v285
  %v595 = vunpack.c.l.b16 %v286
  %v596 = vunpack.c.h.b16 %v286
  %v597 = vunpack.c.l.b16 %v287
  %v598 = vunpack.c.h.b16 %v287
  %v599 = vunpack.c.l.b16 %v288
  %v600 = vunpack.c.h.b16 %v288
  %v601 = vunpack.c.l.b16 %v289
  %v602 = vunpack.c.h.b16 %v289
  %v603 = vunpack.c.l.b16 %v290
  %v604 = vunpack.c.h.b16 %v290
  %v605 = vunpack.c.l.b16 %v291
  %v606 = vunpack.c.h.b16 %v291
  %v607 = vunpack.c.l.b16 %v292
  %v608 = vunpack.c.h.b16 %v292
  %v609 = vunpack.c.l.b16 %v293
  %v610 = vunpack.c.h.b16 %v293
  %v611 = vunpack.c.l.b16 %v294
  %v612 = vunpack.c.h.b16 %v294
  %v613 = vunpack.c.l.b16 %v295
  %v614 = vunpack.c.h.b16 %v295
  %v615 = vunpack.c.l.b16 %v296
  %v616 = vunpack.c.h.b16 %v296
  %v617 = vunpack.c.l.b16 %v297
  %v618 = vunpack.c.h.b16 %v297
  %v619 = vunpack.c.l.b16 %v298
  %v620 = vunpack.c.h.b16 %v298
  %v621 = vunpack.c.l.b16 %v299
  %v622 = vunpack.c.h.b16 %v299
  %v623 = vunpack.c.l.b16 %v300
  %v624 = vunpack.c.h.b16 %v300
  %v625 = vunpack.c.l.b16 %v301
  %v626 = vunpack.c.h.b16 %v301
  %v627 = vunpack.c.l.b16 %v302
  %v628 = vunpack.c.h.b16 %v302
  %v629 = vunpack.c.l.b16 %v303
  %v630 = vunpack.c.h.b16 %v303
  %v631 = vunpack.c.l.b16 %v304
  %v632 = vunpack.c.h.b16 %v304
  %v633 = vunpack.c.l.b16 %v305
  %v634 = vunpack.c.h.b16 %v305
  %v635 = vunpack.c.l.b16 %v306
  %v636 = vunpack.c.h.b16 %v306
  %v637 = vunpack.c.l.b16 %v307
  %v638 = vunpack.c.h.b16 %v307
  %v639 = vunpack.c.l.b16 %v308
  %v640 = vunpack.c.h.b16 %v308
  %v641 = vunpack.c.l.b16 %v309
  %v642 = vunpack.c.h.b16 %v309
  %v643 = vunpack.c.l.b16 %v310
  %v644 = vunpack.c.h.b16 %v310
  %v645 = vunpack.c.l.b16 %v311
  %v646 = vunpack.c.h.b16 %v311
  %v647 = vunpack.c.l.b16 %v312
  %v648 = vunpack.c.h.b16 %v312
  %v649 = vunpack.c.l.b16 %v313
  %v650 = vunpack.c.h.b16 %v313
  %v651 = vunpack.c.l.b16 %v314
  %v652 = vunpack.c.h.b16 %v314
  %v653 = vunpack.c.l.b16 %v315
  %v654 = vunpack.c.h.b16 %v315
  %v655 = vunpack.c.l.b16 %v316
  %v656 = vunpack.c.h.b16 %v316
  %v657 = vunpack.c.l.b16 %v317
  %v658 = vunpack.c.h.b16 %v317
  %v659 = vunpack.c.l.b16 %v318
  %v660 = vunpack.c.h.b16 %v318
  %v661 = vunpack.c.l.b16 %v319
  %v662 = vunpack.c.h.b16 %v319
  %v663 = vunpack.c.l.b16 %v320
  %v664 = vunpack.c.h.b16 %v320
  %v665 = vunpack.c.l.b16 %v321
  %v666 = vunpack.c.h.b16 %v321
  %v667 = vunpack.c.l.b16 %v322
  %v668 = vunpack.c.h.b16 %v322
  %v669 = vunpack.c.l.b16 %v323
  %v670 = vunpack.c.h.b16 %v323
  %v671 = vunpack.c.l.b16 %v324
  %v672 = vunpack.c.h.b16 %v324
  %v673 = vunpack.c.l.b16 %v325
  %v674 = vunpack.c.h.b16 %v325
  %v675 = vunpack.c.l.b16 %v326
  %v676 = vunpack.c.h.b16 %v326
  %v677 = vunpack.c.l.b16 %v327
  %v678 = vunpack.c.h.b16 %v327
  %v679 = vunpack.c.l.b16 %v328
  %v680 = vunpack.c.h.b16 %v328
  %v681 = vunpack.c.l.b16 %v329
  %v682 = vunpack.c.h.b16 %v329
  %v683 = vunpack.c.l.b16 %v330
  %v684 = vunpack.c.h.b16 %v330
  %v685 = vunpack.c.l.b16 %v331
  %v686 = vunpack.c.h.b16 %v331
  %v687 = vunpack.c.l.b16 %v332
  %v688 = vunpack.c.h.b16 %v332
  %v689 = vunpack.c.l.b16 %v333
  %v690 = vunpack.c.h.b16 %v333
  %v691 = vunpack.c.l.b16 %v334
  %v692 = vunpack.c.h.b16 %v334
  %v693 = vunpack.c.l.b16 %v335
  %v694 = vunpack.c.h.b16 %v335
  %v695 = vunpack.c.l.b16 %v336
  %v696 = vunpack.c.h.b16 %v336
  %v697 = vunpack.c.l.b16 %v337
  %v698 = vunpack.c.h.b16 %v337
  %v699 = vunpack.c.l.b16 %v338
  %v700 = vunpack.c.h.b16 %v338
  %v701 = vunpack.c.l.b16 %v339
  %v702 = vunpack.c.h.b16 %v339
  %v703 = vunpack.c.l.b16 %v340
  %v704 = vunpack.c.h.b16 %v340
  %v705 = vunpack.c.l.b16 %v341
  %v706 = vunpack.c.h.b16 %v341
  %v707 = vunpack.c.l.b16 %v342
  %v708 = vunpack.c.h.b16 %v342
  %v709 = vunpack.c.l.b16 %v343
  %v710 = vunpack.c.h.b16 %v343
  %v711 = vunpack.c.l.b16 %v344
  %v712 = vunpack.c.h.b16 %v344
  %v713 = vunpack.c.l.b16 %v345
  %v714 = vunpack.c.h.b16 %v345
  %v715 = vunpack.c.l.b16 %v346
  %v716 = vunpack.c.h.b16 %v346
  %v717 = vunpack.c.l.b16 %v347
  %v718 = vunpack.c.h.b16 %v347
  %v719 = vunpack.c.l.b16 %v348
  %v720 = vunpack.c.h.b16 %v348
  %v721 = vunpack.c.l.b16 %v349
  %v722 = vunpack.c.h.b16 %v349
  %v723 = vunpack.c.l.b16 %v350
  %v724 = vunpack.c.h.b16 %v350
  %v725 = vunpack.c.l.b16 %v351
  %v726 = vunpack.c.h.b16 %v351
  %v727 = vunpack.c.l.b16 %v352
  %v728 = vunpack.c.h.b16 %v352
  %v729 = vunpack.c.l.b16 %v353
  %v730 = vunpack.c.h.b16 %v353
  %v731 = vunpack.c.l.b16 %v354
  %v732 = vunpack.c.h.b16 %v354
  %v733 = vunpack.c.l.b16 %v355
  %v734 = vunpack.c.h.b16 %v355
  %v735 = vunpack.c.l.b16 %v356
  %v736 = vunpack.c.h.b16 %v356
  %v737 = vunpack.c.l.b16 %v357
  %v738 = vunpack.c.h.b16 %v357
  %v739 = vunpack.c.l.b16 %v358
  %v740 = vunpack.c.h.b16 %v358
  %v741 = vunpack.c.l.b16 %v359
  %v742 = vunpack.c.h.b16 %v359
  %v743 = vunpack.c.l.b16 %v360
  %v744 = vunpack.c.h.b16 %v360
  %v745 = vunpack.c.l.b16 %v361
  %v746 = vunpack.c.h.b16 %v361
  %v747 = vunpack.c.l.b16 %v362
  %v748 = vunpack.c.h.b16 %v362
  %v749 = vunpack.c.l.b16 %v363
  %v750 = vunpack.c.h.b16 %v363
  %v751 = vunpack.c.l.b16 %v364
  %v752 = vunpack.c.h.b16 %v364
  %v753 = vunpack.c.l.b16 %v365
  %v754 = vunpack.c.h.b16 %v365
  %v755 = vunpack.c.l.b16 %v366
  %v756 = vunpack.c.h.b16 %v366
  %v757 = vunpack.c.l.b16 %v367
  %v758 = vunpack.c.h.b16 %v367
  %v759 = vunpack.c.l.b16 %v368
  %v760 = vunpack.c.h.b16 %v368
  %v761 = vunpack.c.l.b16 %v369
  %v762 = vunpack.c.h.b16 %v369
  %v763 = vunpack.c.l.b16 %v370
  %v764 = vunpack.c.h.b16 %v370
  %v765 = vunpack.c.l.b16 %v371
  %v766 = vunpack.c.h.b16 %v371
  %v767 = vunpack.c.l.b16 %v372
  %v768 = vunpack.c.h.b16 %v372
  %v769 = vunpack.c.l.b16 %v373
  %v770 = vunpack.c.h.b16 %v373
  %v771 = vunpack.c.l.b16 %v374
  %v772 = vunpack.c.h.b16 %v374
  %v773 = vunpack.c.l.b16 %v375
  %v774 = vunpack.c.h.b16 %v375
  %v775 = vunpack.c.l.b16 %v376
  %v776 = vunpack.c.h.b16 %v376
  %v777 = vunpack.c.l.b16 %v377
  %v778 = vunpack.c.h.b16 %v377
  %v779 = vunpack.c.l.b16 %v378
  %v780 = vunpack.c.h.b16 %v378
  %v781 = vunpack.c.l.b16 %v379
  %v782 = vunpack.c.h.b16 %v379
  %v783 = vunpack.c.l.b16 %v380
  %v784 = vunpack.c.h.b16 %v380
  %v785 = vunpack.c.l.b16 %v381
  %v786 = vunpack.c.h.b16 %v381
  %v787 = vunpack.c.l.b16 %v382
  %v788 = vunpack.c.h.b16 %v382
  %v789 = vpack.c.b16 %v537, %v533
  %v790 = vpack.c.b16 %v538, %v534
  %v791 = vpack.c.b16 %v539, %v535
  %v792 = vpack.c.b16 %v540, %v536
  %v793 = vpack.c.b16 %v545, %v541
  %v794 = vpack.c.b16 %v546, %v542
  %v795 = vpack.c.b16 %v547, %v543
  %v796 = vpack.c.b16 %v548, %v544
  %v797 = vpack.c.b16 %v553, %v549
  %v798 = vpack.c.b16 %v554, %v550
  %v799 = vpack.c.b16 %v555, %v551
  %v800 = vpack.c.b16 %v556, %v552
  %v801 = vpack.c.b16 %v561, %v557
  %v802 = vpack.c.b16 %v562, %v558
  %v803 = vpack.c.b16 %v563, %v559
  %v804 = vpack.c.b16 %v564, %v560
  %v805 = vpack.c.b16 %v569, %v565
  %v806 = vpack.c.b16 %v570, %v566
  %v807 = vpack.c.b16 %v571, %v567
  %v808 = vpack.c.b16 %v572, %v568
  %v809 = vpack.c.b16 %v577, %v573
  %v810 = vpack.c.b16 %v578, %v574
  %v811 = vpack.c.b16 %v579, %v575
  %v812 = vpack.c.b16 %v580, %v576
  %v813 = vpack.c.b16 %v585, %v581
  %v814 = vpack.c.b16 %v586, %v582
  %v815 = vpack.c.b16 %v587, %v583
  %v816 = vpack.c.b16 %v588, %v584
  %v817 = vpack.c.b16 %v593, %v589
  %v818 = vpack.c.b16 %v594, %v590
  %v819 = vpack.c.b16 %v595, %v591
  %v820 = vpack.c.b16 %v596, %v592
  %v821 = vpack.c.b16 %v601, %v597
  %v822 = vpack.c.b16 %v602, %v598
  %v823 = vpack.c.b16 %v603, %v599
  %v824 = vpack.c.b16 %v604, %v600
  %v825 = vpack.c.b16 %v609, %v605
  %v826 = vpack.c.b16 %v610, %v606
  %v827 = vpack.c.b16 %v611, %v607
  %v828 = vpack.c.b16 %v612, %v608
  %v829 = vpack.c.b16 %v617, %v613
  %v830 = vpack.c.b16 %v618, %v614
  %v831 = vpack.c.b16 %v619, %v615
  %v832 = vpack.c.b16 %v620, %v616
  %v833 = vpack.c.b16 %v625, %v621
  %v834 = vpack.c.b16 %v626, %v622
  %v835 = vpack.c.b16 %v627, %v623
  %v836 = vpack.c.b16 %v628, %v624
  %v837 = vpack.c.b16 %v633, %v629
  %v838 = vpack.c.b16 %v634, %v630
  %v839 = vpack.c.b16 %v635, %v631
  %v840 = vpack.c.b16 %v636, %v632
  %v841 = vpack.c.b16 %v641, %v637
  %v842 = vpack.c.b16 %v642, %v638
  %v843 = vpack.c.b16 %v643, %v639
  %v844 = vpack.c.b16 %v644, %v640
  %v845 = vpack.c.b16 %v649, %v645
  %v846 = vpack.c.b16 %v650, %v646
  %v847 = vpack.c.b16 %v651, %v647
  %v848 = vpack.c.b16 %v652, %v648
  %v849 = vpack.c.b16 %v657, %v653
  %v850 = vpack.c.b16 %v658, %v654
  %v851 = vpack.c.b16 %v659, %v655
  %v852 = vpack.c.b16 %v660, %v656
  %v853 = vpack.c.b16 %v665, %v661
  %v854 = vpack.c.b16 %v666, %v662
  %v855 = vpack.c.b16 %v667, %v663
  %v856 = vpack.c.b16 %v668, %v664
  %v857 = vpack.c.b16 %v673, %v669
  %v858 = vpack.c.b16 %v674, %v670
  %v859 = vpack.c.b16 %v675, %v671
  %v860 = vpack.c.b16 %v676, %v672
  %v861 = vpack.c.b16 %v681, %v677
  %v862 = vpack.c.b16 %v682, %v678
  %v863 = vpack.c.b16 %v683, %v679
  %v864 = vpack.c.b16 %v684, %v680
  %v865 = vpack.c.b16 %v689, %v685
  %v866 = vpack.c.b16 %v690, %v686
  %v867 = vpack.c.b16 %v691, %v687
  %v868 = vpack.c.b16 %v692, %v688
  %v869 = vpack.c.b16 %v697, %v693
  %v870 = vpack.c.b16 %v698, %v694
  %v871 = vpack.c.b16 %v699, %v695
  %v872 = vpack.c.b16 %v700, %v696
  %v873 = vpack.c.b16 %v705, %v701
  %v874 = vpack.c.b16 %v706, %v702
  %v875 = vpack.c.b16 %v707, %v703
  %v876 = vpack.c.b16 %v708, %v704
  %v877 = vpack.c.b16 %v713, %v709
  %v878 = vpack.c.b16 %v714, %v710
  %v879 = vpack.c.b16 %v715, %v711
  %v880 = vpack.c.b16 %v716, %v712
  %v881 = vpack.c.b16 %v721, %v717
  %v882 = vpack.c.b16 %v722, %v718
  %v883 = vpack.c.b16 %v723, %v719
  %v884 = vpack.c.b16 %v724, %v720
  %v885 = vpack.c.b16 %v729, %v725
  %v886 = vpack.c.b16 %v730, %v726
  %v887 = vpack.c.b16 %v731, %v727
  %v888 = vpack.c.b16 %v732, %v728
  %v889 = vpack.c.b16 %v737, %v733
  %v890 = vpack.c.b16 %v738, %v734
  %v891 = vpack.c.b16 %v739, %v735
  %v892 = vpack.c.b16 %v740, %v736
  %v893 = vpack.c.b16 %v745, %v741
  %v894 = vpack.c.b16 %v746, %v742
  %v895 = vpack.c.b16 %v747, %v743
  %v896 = vpack.c.b16 %v748, %v744
  %v897 = vpack.c.b16 %v753, %v749
  %v898 = vpack.c.b16 %v754, %v750
  %v899 = vpack.c.b16 %v755, %v751
  %v900 = vpack.c.b16 %v756, %v752
  %v901 = vpack.c.b16 %v761, %v757
  %v902 = vpack.c.b16 %v762, %v758
  %v903 = vpack.c.b16 %v763, %v759
  %v904 = vpack.c.b16 %v764, %v760
  %v905 = vpack.c.b16 %v769, %v765
  %v906 = vpack.c.b16 %v770, %v766
  %v907 = vpack.c.b16 %v771, %v767
  %v908 = vpack.c.b16 %v772, %v768
  %v909 = vpack.c.b16 %v777, %v773
  %v910 = vpack.c.b16 %v778, %v774
  %v911 = vpack.c.b16 %v779, %v775
  %v912 = vpack.c.b16 %v780, %v776
  %v913 = vpack.c.b16 %v785, %v781
  %v914 = vpack.c.b16 %v786, %v782
  %v915 = vpack.c.b16 %v787, %v783
  %v916 = vpack.c.b16 %v788, %v784
  %1045 = vmatprep.subr.bf16.mxu0 %v818
  %1046 = vmatpush1.bf16.msra.mxu0 %v817
  %1047 = vmatprep.subr.bf16.mxu0 %v814
  %1048 = vmatpush1.bf16.msra.mxu0 %v813
  %1049 = vmatprep.subr.bf16.mxu0 %v810
  %1050 = vmatpush1.bf16.msra.mxu0 %v809
  %1051 = vmatprep.subr.bf16.mxu0 %v806
  %1052 = vmatpush1.bf16.msra.mxu0 %v805
  %1053 = vmatprep.subr.bf16.mxu0 %v802
  %1054 = vmatpush1.bf16.msra.mxu0 %v801
  %1055 = vmatprep.subr.bf16.mxu0 %v798
  %1056 = vmatpush1.bf16.msra.mxu0 %v797
  %1057 = vmatprep.subr.bf16.mxu0 %v794
  %1058 = vmatpush1.bf16.msra.mxu0 %v793
  %1059 = vmatprep.subr.bf16.mxu0 %v790
  %1060 = vmatpush1.bf16.msra.mxu0 %v789
  %1061 = vmatprep.subr.bf16.mxu0 %v850
  %1062 = vmatpush2.bf16.msra.mxu0 %v849
  %1063 = vmatprep.subr.bf16.mxu0 %v846
  %1064 = vmatpush2.bf16.msra.mxu0 %v845
  %1065 = vmatprep.subr.bf16.mxu0 %v842
  %1066 = vmatpush2.bf16.msra.mxu0 %v841
  %1067 = vmatprep.subr.bf16.mxu0 %v838
  %1068 = vmatpush2.bf16.msra.mxu0 %v837
  %1069 = vmatprep.subr.bf16.mxu0 %v834
  %1070 = vmatpush2.bf16.msra.mxu0 %v833
  %1071 = vmatprep.subr.bf16.mxu0 %v830
  %1072 = vmatpush2.bf16.msra.mxu0 %v829
  %1073 = vmatprep.subr.bf16.mxu0 %v826
  %1074 = vmatpush2.bf16.msra.mxu0 %v825
  %1075 = vmatprep.subr.bf16.mxu0 %v822
  %1076 = vmatpush2.bf16.msra.mxu0 %v821
  %1077 = vmatprep.mubr.bf16.mxu0 %v252
  %1078 = vmatmul.mubr.bf16.gmra.mxu0 %v251
  %v1079 = vpop.f32.mrf.mxu0
  %v1080 = vadd.f32 %v388, %v1079
  %v1081 = vpop.f32.mrf.mxu0
  %v1082 = vadd.f32 %v392, %v1081
  %v1083 = vpop.f32.mrf.mxu0
  %v1084 = vpop.f32.mrf.mxu0
  %1085 = vdwg.mxu0
  %1086 = vmatprep.subr.bf16.mxu0 %v882
  %1087 = vmatpush1.bf16.msra.mxu0 %v881
  %1088 = vmatprep.subr.bf16.mxu0 %v878
  %1089 = vmatpush1.bf16.msra.mxu0 %v877
  %1090 = vmatprep.subr.bf16.mxu0 %v874
  %1091 = vmatpush1.bf16.msra.mxu0 %v873
  %1092 = vmatprep.subr.bf16.mxu0 %v870
  %1093 = vmatpush1.bf16.msra.mxu0 %v869
  %1094 = vmatprep.subr.bf16.mxu0 %v866
  %1095 = vmatpush1.bf16.msra.mxu0 %v865
  %1096 = vmatprep.subr.bf16.mxu0 %v862
  %1097 = vmatpush1.bf16.msra.mxu0 %v861
  %1098 = vmatprep.subr.bf16.mxu0 %v858
  %1099 = vmatpush1.bf16.msra.mxu0 %v857
  %1100 = vmatprep.subr.bf16.mxu0 %v854
  %1101 = vmatpush1.bf16.msra.mxu0 %v853
  %1102 = vmatprep.subr.bf16.mxu0 %v914
  %1103 = vmatpush2.bf16.msra.mxu0 %v913
  %1104 = vmatprep.subr.bf16.mxu0 %v910
  %1105 = vmatpush2.bf16.msra.mxu0 %v909
  %1106 = vmatprep.subr.bf16.mxu0 %v906
  %1107 = vmatpush2.bf16.msra.mxu0 %v905
  %1108 = vmatprep.subr.bf16.mxu0 %v902
  %1109 = vmatpush2.bf16.msra.mxu0 %v901
  %1110 = vmatprep.subr.bf16.mxu0 %v898
  %1111 = vmatpush2.bf16.msra.mxu0 %v897
  %1112 = vmatprep.subr.bf16.mxu0 %v894
  %1113 = vmatpush2.bf16.msra.mxu0 %v893
  %1114 = vmatprep.subr.bf16.mxu0 %v890
  %1115 = vmatpush2.bf16.msra.mxu0 %v889
  %1116 = vmatprep.subr.bf16.mxu0 %v886
  %1117 = vmatpush2.bf16.msra.mxu0 %v885
  %1118 = vmatprep.mubr.bf16.mxu0 %v254
  %1119 = vmatmul.mubr.bf16.gmra.mxu0 %v253
  %v1120 = vpop.f32.mrf.mxu0
  %v1121 = vadd.f32 %v1080, %v1120
  %v1122 = vpop.f32.mrf.mxu0
  %v1123 = vadd.f32 %v1082, %v1122
  %v1124 = vpop.f32.mrf.mxu0
  %v1125 = vpop.f32.mrf.mxu0
  %1126 = vdwg.mxu0
  %1127 = vmatprep.subr.bf16.mxu0 %v820
  %1128 = vmatpush1.bf16.msra.mxu0 %v819
  %1129 = vmatprep.subr.bf16.mxu0 %v816
  %1130 = vmatpush1.bf16.msra.mxu0 %v815
  %1131 = vmatprep.subr.bf16.mxu0 %v812
  %1132 = vmatpush1.bf16.msra.mxu0 %v811
  %1133 = vmatprep.subr.bf16.mxu0 %v808
  %1134 = vmatpush1.bf16.msra.mxu0 %v807
  %1135 = vmatprep.subr.bf16.mxu0 %v804
  %1136 = vmatpush1.bf16.msra.mxu0 %v803
  %1137 = vmatprep.subr.bf16.mxu0 %v800
  %1138 = vmatpush1.bf16.msra.mxu0 %v799
  %1139 = vmatprep.subr.bf16.mxu0 %v796
  %1140 = vmatpush1.bf16.msra.mxu0 %v795
  %1141 = vmatprep.subr.bf16.mxu0 %v792
  %1142 = vmatpush1.bf16.msra.mxu0 %v791
  %1143 = vmatprep.subr.bf16.mxu0 %v852
  %1144 = vmatpush2.bf16.msra.mxu0 %v851
  %1145 = vmatprep.subr.bf16.mxu0 %v848
  %1146 = vmatpush2.bf16.msra.mxu0 %v847
  %1147 = vmatprep.subr.bf16.mxu0 %v844
  %1148 = vmatpush2.bf16.msra.mxu0 %v843
  %1149 = vmatprep.subr.bf16.mxu0 %v840
  %1150 = vmatpush2.bf16.msra.mxu0 %v839
  %1151 = vmatprep.subr.bf16.mxu0 %v836
  %1152 = vmatpush2.bf16.msra.mxu0 %v835
  %1153 = vmatprep.subr.bf16.mxu0 %v832
  %1154 = vmatpush2.bf16.msra.mxu0 %v831
  %1155 = vmatprep.subr.bf16.mxu0 %v828
  %1156 = vmatpush2.bf16.msra.mxu0 %v827
  %1157 = vmatprep.subr.bf16.mxu0 %v824
  %1158 = vmatpush2.bf16.msra.mxu0 %v823
  %1159 = vmatprep.mubr.bf16.mxu0 %v252
  %1160 = vmatmul.mubr.bf16.gmra.mxu0 %v251
  %v1161 = vpop.f32.mrf.mxu0
  %v1162 = vadd.f32 %v396, %v1161
  %v1163 = vpop.f32.mrf.mxu0
  %v1164 = vadd.f32 %v400, %v1163
  %v1165 = vpop.f32.mrf.mxu0
  %v1166 = vpop.f32.mrf.mxu0
  %1167 = vdwg.mxu0
  %1168 = vmatprep.subr.bf16.mxu0 %v884
  %1169 = vmatpush1.bf16.msra.mxu0 %v883
  %1170 = vmatprep.subr.bf16.mxu0 %v880
  %1171 = vmatpush1.bf16.msra.mxu0 %v879
  %1172 = vmatprep.subr.bf16.mxu0 %v876
  %1173 = vmatpush1.bf16.msra.mxu0 %v875
  %1174 = vmatprep.subr.bf16.mxu0 %v872
  %1175 = vmatpush1.bf16.msra.mxu0 %v871
  %1176 = vmatprep.subr.bf16.mxu0 %v868
  %1177 = vmatpush1.bf16.msra.mxu0 %v867
  %1178 = vmatprep.subr.bf16.mxu0 %v864
  %1179 = vmatpush1.bf16.msra.mxu0 %v863
  %1180 = vmatprep.subr.bf16.mxu0 %v860
  %1181 = vmatpush1.bf16.msra.mxu0 %v859
  %1182 = vmatprep.subr.bf16.mxu0 %v856
  %1183 = vmatpush1.bf16.msra.mxu0 %v855
  %1184 = vmatprep.subr.bf16.mxu0 %v916
  %1185 = vmatpush2.bf16.msra.mxu0 %v915
  %1186 = vmatprep.subr.bf16.mxu0 %v912
  %1187 = vmatpush2.bf16.msra.mxu0 %v911
  %1188 = vmatprep.subr.bf16.mxu0 %v908
  %1189 = vmatpush2.bf16.msra.mxu0 %v907
  %1190 = vmatprep.subr.bf16.mxu0 %v904
  %1191 = vmatpush2.bf16.msra.mxu0 %v903
  %1192 = vmatprep.subr.bf16.mxu0 %v900
  %1193 = vmatpush2.bf16.msra.mxu0 %v899
  %1194 = vmatprep.subr.bf16.mxu0 %v896
  %1195 = vmatpush2.bf16.msra.mxu0 %v895
  %1196 = vmatprep.subr.bf16.mxu0 %v892
  %1197 = vmatpush2.bf16.msra.mxu0 %v891
  %1198 = vmatprep.subr.bf16.mxu0 %v888
  %1199 = vmatpush2.bf16.msra.mxu0 %v887
  %1200 = vmatprep.mubr.bf16.mxu0 %v254
  %1201 = vmatmul.mubr.bf16.gmra.mxu0 %v253
  %v1202 = vpop.f32.mrf.mxu0
  %v1203 = vadd.f32 %v1162, %v1202
  %v1204 = vpop.f32.mrf.mxu0
  %v1205 = vadd.f32 %v1164, %v1204
  %v1206 = vpop.f32.mrf.mxu0
  %v1207 = vpop.f32.mrf.mxu0
  %1208 = vdwg.mxu0
  %v1209 = vmax.f32 %v1121, 0.0
  %v1210 = vmax.f32 %v1123, 0.0
  %v1211 = vmax.f32 %v1203, 0.0
  %v1212 = vmax.f32 %v1205, 0.0
  %v1213 = vpack.c.bf16 %v1209, %v1209
  %v1214 = vpack.c.bf16 %v1210, %v1210
  %v1215 = vpack.c.bf16 %v1211, %v1211
  %v1216 = vpack.c.bf16 %v1212, %v1212
  %v1217 = vld [vmem:[%s5] sm:$0xf]
  %v1218 = vld [vmem:[%s5 + $0x4] sm:$0xf]
  %v1219 = vld [vmem:[%s5 + $0x8] sm:$0xf]
  %v1220 = vld [vmem:[%s5 + $0xc] sm:$0xf]
  %v1221 = vld [vmem:[%s5 + $0x10] sm:$0xf]
  %v1222 = vld [vmem:[%s5 + $0x14] sm:$0xf]
  %v1223 = vld [vmem:[%s5 + $0x18] sm:$0xf]
  %v1224 = vld [vmem:[%s5 + $0x1c] sm:$0xf]
  %v1225 = vld [vmem:[%s5 + $0x20] sm:$0xf]
  %v1226 = vld [vmem:[%s5 + $0x24] sm:$0xf]
  %v1227 = vld [vmem:[%s5 + $0x28] sm:$0xf]
  %v1228 = vld [vmem:[%s5 + $0x2c] sm:$0xf]
  %v1229 = vld [vmem:[%s5 + $0x30] sm:$0xf]
  %v1230 = vld [vmem:[%s5 + $0x34] sm:$0xf]
  %v1231 = vld [vmem:[%s5 + $0x38] sm:$0xf]
  %v1232 = vld [vmem:[%s5 + $0x3c] sm:$0xf]
  %v1233 = vld [vmem:[%s5 + $0x40] sm:$0xf]
  %v1234 = vld [vmem:[%s5 + $0x44] sm:$0xf]
  %v1235 = vld [vmem:[%s5 + $0x48] sm:$0xf]
  %v1236 = vld [vmem:[%s5 + $0x4c] sm:$0xf]
  %v1237 = vld [vmem:[%s5 + $0x50] sm:$0xf]
  %v1238 = vld [vmem:[%s5 + $0x54] sm:$0xf]
  %v1239 = vld [vmem:[%s5 + $0x58] sm:$0xf]
  %v1240 = vld [vmem:[%s5 + $0x5c] sm:$0xf]
  %v1241 = vld [vmem:[%s5 + $0x60] sm:$0xf]
  %v1242 = vld [vmem:[%s5 + $0x64] sm:$0xf]
  %v1243 = vld [vmem:[%s5 + $0x68] sm:$0xf]
  %v1244 = vld [vmem:[%s5 + $0x6c] sm:$0xf]
  %v1245 = vld [vmem:[%s5 + $0x70] sm:$0xf]
  %v1246 = vld [vmem:[%s5 + $0x74] sm:$0xf]
  %v1247 = vld [vmem:[%s5 + $0x78] sm:$0xf]
  %v1248 = vld [vmem:[%s5 + $0x7c] sm:$0xf]
  %v1249 = vld [vmem:[%s5 + $0x80] sm:$0xf]
  %v1250 = vld [vmem:[%s5 + $0x84] sm:$0xf]
  %v1251 = vld [vmem:[%s5 + $0x88] sm:$0xf]
  %v1252 = vld [vmem:[%s5 + $0x8c] sm:$0xf]
  %v1253 = vld [vmem:[%s5 + $0x90] sm:$0xf]
  %v1254 = vld [vmem:[%s5 + $0x94] sm:$0xf]
  %v1255 = vld [vmem:[%s5 + $0x98] sm:$0xf]
  %v1256 = vld [vmem:[%s5 + $0x9c] sm:$0xf]
  %v1257 = vld [vmem:[%s5 + $0xa0] sm:$0xf]
  %v1258 = vld [vmem:[%s5 + $0xa4] sm:$0xf]
  %v1259 = vld [vmem:[%s5 + $0xa8] sm:$0xf]
  %v1260 = vld [vmem:[%s5 + $0xac] sm:$0xf]
  %v1261 = vld [vmem:[%s5 + $0xb0] sm:$0xf]
  %v1262 = vld [vmem:[%s5 + $0xb4] sm:$0xf]
  %v1263 = vld [vmem:[%s5 + $0xb8] sm:$0xf]
  %v1264 = vld [vmem:[%s5 + $0xbc] sm:$0xf]
  %v1265 = vld [vmem:[%s5 + $0xc0] sm:$0xf]
  %v1266 = vld [vmem:[%s5 + $0xc4] sm:$0xf]
  %v1267 = vld [vmem:[%s5 + $0xc8] sm:$0xf]
  %v1268 = vld [vmem:[%s5 + $0xcc] sm:$0xf]
  %v1269 = vld [vmem:[%s5 + $0xd0] sm:$0xf]
  %v1270 = vld [vmem:[%s5 + $0xd4] sm:$0xf]
  %v1271 = vld [vmem:[%s5 + $0xd8] sm:$0xf]
  %v1272 = vld [vmem:[%s5 + $0xdc] sm:$0xf]
  %v1273 = vld [vmem:[%s5 + $0xe0] sm:$0xf]
  %v1274 = vld [vmem:[%s5 + $0xe4] sm:$0xf]
  %v1275 = vld [vmem:[%s5 + $0xe8] sm:$0xf]
  %v1276 = vld [vmem:[%s5 + $0xec] sm:$0xf]
  %v1277 = vld [vmem:[%s5 + $0xf0] sm:$0xf]
  %v1278 = vld [vmem:[%s5 + $0xf4] sm:$0xf]
  %v1279 = vld [vmem:[%s5 + $0xf8] sm:$0xf]
  %v1280 = vld [vmem:[%s5 + $0xfc] sm:$0xf]
  %v1281 = vld [vmem:[%s6] sm:$0x1]
  %v1283 = vlaneseq
  %v1284 = vshrl.u32 %v1283, 7
  %v1285 = vsub.s32 0, %v1284
  %v1286 = vrot.slane %v1281, %v1285
  %v1352 = vunpack.c.l.b16 %v1217
  %v1353 = vunpack.c.l.b16 %v1218
  %v1354 = vunpack.c.l.b16 %v1219
  %v1355 = vunpack.c.l.b16 %v1220
  %v1356 = vunpack.c.l.b16 %v1221
  %v1357 = vunpack.c.l.b16 %v1222
  %v1358 = vunpack.c.l.b16 %v1223
  %v1359 = vunpack.c.l.b16 %v1224
  %v1360 = vunpack.c.l.b16 %v1225
  %v1361 = vunpack.c.l.b16 %v1226
  %v1362 = vunpack.c.l.b16 %v1227
  %v1363 = vunpack.c.l.b16 %v1228
  %v1364 = vunpack.c.l.b16 %v1229
  %v1365 = vunpack.c.l.b16 %v1230
  %v1366 = vunpack.c.l.b16 %v1231
  %v1367 = vunpack.c.l.b16 %v1232
  %v1368 = vunpack.c.l.b16 %v1233
  %v1369 = vunpack.c.l.b16 %v1234
  %v1370 = vunpack.c.l.b16 %v1235
  %v1371 = vunpack.c.l.b16 %v1236
  %v1372 = vunpack.c.l.b16 %v1237
  %v1373 = vunpack.c.l.b16 %v1238
  %v1374 = vunpack.c.l.b16 %v1239
  %v1375 = vunpack.c.l.b16 %v1240
  %v1376 = vunpack.c.l.b16 %v1241
  %v1377 = vunpack.c.l.b16 %v1242
  %v1378 = vunpack.c.l.b16 %v1243
  %v1379 = vunpack.c.l.b16 %v1244
  %v1380 = vunpack.c.l.b16 %v1245
  %v1381 = vunpack.c.l.b16 %v1246
  %v1382 = vunpack.c.l.b16 %v1247
  %v1383 = vunpack.c.l.b16 %v1248
  %v1384 = vunpack.c.l.b16 %v1249
  %v1385 = vunpack.c.l.b16 %v1250
  %v1386 = vunpack.c.l.b16 %v1251
  %v1387 = vunpack.c.l.b16 %v1252
  %v1388 = vunpack.c.l.b16 %v1253
  %v1389 = vunpack.c.l.b16 %v1254
  %v1390 = vunpack.c.l.b16 %v1255
  %v1391 = vunpack.c.l.b16 %v1256
  %v1392 = vunpack.c.l.b16 %v1257
  %v1393 = vunpack.c.l.b16 %v1258
  %v1394 = vunpack.c.l.b16 %v1259
  %v1395 = vunpack.c.l.b16 %v1260
  %v1396 = vunpack.c.l.b16 %v1261
  %v1397 = vunpack.c.l.b16 %v1262
  %v1398 = vunpack.c.l.b16 %v1263
  %v1399 = vunpack.c.l.b16 %v1264
  %v1400 = vunpack.c.l.b16 %v1265
  %v1401 = vunpack.c.l.b16 %v1266
  %v1402 = vunpack.c.l.b16 %v1267
  %v1403 = vunpack.c.l.b16 %v1268
  %v1404 = vunpack.c.l.b16 %v1269
  %v1405 = vunpack.c.l.b16 %v1270
  %v1406 = vunpack.c.l.b16 %v1271
  %v1407 = vunpack.c.l.b16 %v1272
  %v1408 = vunpack.c.l.b16 %v1273
  %v1409 = vunpack.c.l.b16 %v1274
  %v1410 = vunpack.c.l.b16 %v1275
  %v1411 = vunpack.c.l.b16 %v1276
  %v1412 = vunpack.c.l.b16 %v1277
  %v1413 = vunpack.c.l.b16 %v1278
  %v1414 = vunpack.c.l.b16 %v1279
  %v1415 = vunpack.c.l.b16 %v1280
  %v1416 = vpack.c.b16 %v1353, %v1352
  %v1417 = vpack.c.b16 %v1355, %v1354
  %v1418 = vpack.c.b16 %v1357, %v1356
  %v1419 = vpack.c.b16 %v1359, %v1358
  %v1420 = vpack.c.b16 %v1361, %v1360
  %v1421 = vpack.c.b16 %v1363, %v1362
  %v1422 = vpack.c.b16 %v1365, %v1364
  %v1423 = vpack.c.b16 %v1367, %v1366
  %v1424 = vpack.c.b16 %v1369, %v1368
  %v1425 = vpack.c.b16 %v1371, %v1370
  %v1426 = vpack.c.b16 %v1373, %v1372
  %v1427 = vpack.c.b16 %v1375, %v1374
  %v1428 = vpack.c.b16 %v1377, %v1376
  %v1429 = vpack.c.b16 %v1379, %v1378
  %v1430 = vpack.c.b16 %v1381, %v1380
  %v1431 = vpack.c.b16 %v1383, %v1382
  %v1432 = vpack.c.b16 %v1385, %v1384
  %v1433 = vpack.c.b16 %v1387, %v1386
  %v1434 = vpack.c.b16 %v1389, %v1388
  %v1435 = vpack.c.b16 %v1391, %v1390
  %v1436 = vpack.c.b16 %v1393, %v1392
  %v1437 = vpack.c.b16 %v1395, %v1394
  %v1438 = vpack.c.b16 %v1397, %v1396
  %v1439 = vpack.c.b16 %v1399, %v1398
  %v1440 = vpack.c.b16 %v1401, %v1400
  %v1441 = vpack.c.b16 %v1403, %v1402
  %v1442 = vpack.c.b16 %v1405, %v1404
  %v1443 = vpack.c.b16 %v1407, %v1406
  %v1444 = vpack.c.b16 %v1409, %v1408
  %v1445 = vpack.c.b16 %v1411, %v1410
  %v1446 = vpack.c.b16 %v1413, %v1412
  %v1447 = vpack.c.b16 %v1415, %v1414
  %1480 = vmatprep.subr.bf16.mxu0 0
  %1481 = vmatpush1.bf16.msra.mxu0 %v1423
  %1482 = vmatprep.subr.bf16.mxu0 0
  %1483 = vmatpush1.bf16.msra.mxu0 %v1422
  %1484 = vmatprep.subr.bf16.mxu0 0
  %1485 = vmatpush1.bf16.msra.mxu0 %v1421
  %1486 = vmatprep.subr.bf16.mxu0 0
  %1487 = vmatpush1.bf16.msra.mxu0 %v1420
  %1488 = vmatprep.subr.bf16.mxu0 0
  %1489 = vmatpush1.bf16.msra.mxu0 %v1419
  %1490 = vmatprep.subr.bf16.mxu0 0
  %1491 = vmatpush1.bf16.msra.mxu0 %v1418
  %1492 = vmatprep.subr.bf16.mxu0 0
  %1493 = vmatpush1.bf16.msra.mxu0 %v1417
  %1494 = vmatprep.subr.bf16.mxu0 0
  %1495 = vmatpush1.bf16.msra.mxu0 %v1416
  %1496 = vmatprep.subr.bf16.mxu0 0
  %1497 = vmatpush2.bf16.msra.mxu0 %v1431
  %1498 = vmatprep.subr.bf16.mxu0 0
  %1499 = vmatpush2.bf16.msra.mxu0 %v1430
  %1500 = vmatprep.subr.bf16.mxu0 0
  %1501 = vmatpush2.bf16.msra.mxu0 %v1429
  %1502 = vmatprep.subr.bf16.mxu0 0
  %1503 = vmatpush2.bf16.msra.mxu0 %v1428
  %1504 = vmatprep.subr.bf16.mxu0 0
  %1505 = vmatpush2.bf16.msra.mxu0 %v1427
  %1506 = vmatprep.subr.bf16.mxu0 0
  %1507 = vmatpush2.bf16.msra.mxu0 %v1426
  %1508 = vmatprep.subr.bf16.mxu0 0
  %1509 = vmatpush2.bf16.msra.mxu0 %v1425
  %1510 = vmatprep.subr.bf16.mxu0 0
  %1511 = vmatpush2.bf16.msra.mxu0 %v1424
  %1512 = vmatprep.mubr.bf16.mxu0 %v1214
  %1513 = vmatmul.mubr.bf16.gmra.mxu0 %v1213
  %v1514 = vpop.f32.mrf.mxu0
  %v1515 = vadd.f32 %v1286, %v1514
  %v1516 = vpop.f32.mrf.mxu0
  %v1517 = vpop.f32.mrf.mxu0
  %v1518 = vpop.f32.mrf.mxu0
  %1519 = vdwg.mxu0
  %1520 = vmatprep.subr.bf16.mxu0 0
  %1521 = vmatpush1.bf16.msra.mxu0 %v1439
  %1522 = vmatprep.subr.bf16.mxu0 0
  %1523 = vmatpush1.bf16.msra.mxu0 %v1438
  %1524 = vmatprep.subr.bf16.mxu0 0
  %1525 = vmatpush1.bf16.msra.mxu0 %v1437
  %1526 = vmatprep.subr.bf16.mxu0 0
  %1527 = vmatpush1.bf16.msra.mxu0 %v1436
  %1528 = vmatprep.subr.bf16.mxu0 0
  %1529 = vmatpush1.bf16.msra.mxu0 %v1435
  %1530 = vmatprep.subr.bf16.mxu0 0
  %1531 = vmatpush1.bf16.msra.mxu0 %v1434
  %1532 = vmatprep.subr.bf16.mxu0 0
  %1533 = vmatpush1.bf16.msra.mxu0 %v1433
  %1534 = vmatprep.subr.bf16.mxu0 0
  %1535 = vmatpush1.bf16.msra.mxu0 %v1432
  %1536 = vmatprep.subr.bf16.mxu0 0
  %1537 = vmatpush2.bf16.msra.mxu0 %v1447
  %1538 = vmatprep.subr.bf16.mxu0 0
  %1539 = vmatpush2.bf16.msra.mxu0 %v1446
  %1540 = vmatprep.subr.bf16.mxu0 0
  %1541 = vmatpush2.bf16.msra.mxu0 %v1445
  %1542 = vmatprep.subr.bf16.mxu0 0
  %1543 = vmatpush2.bf16.msra.mxu0 %v1444
  %1544 = vmatprep.subr.bf16.mxu0 0
  %1545 = vmatpush2.bf16.msra.mxu0 %v1443
  %1546 = vmatprep.subr.bf16.mxu0 0
  %1547 = vmatpush2.bf16.msra.mxu0 %v1442
  %1548 = vmatprep.subr.bf16.mxu0 0
  %1549 = vmatpush2.bf16.msra.mxu0 %v1441
  %1550 = vmatprep.subr.bf16.mxu0 0
  %1551 = vmatpush2.bf16.msra.mxu0 %v1440
  %1552 = vmatprep.mubr.bf16.mxu0 %v1216
  %1553 = vmatmul.mubr.bf16.gmra.mxu0 %v1215
  %v1554 = vpop.f32.mrf.mxu0
  %v1555 = vadd.f32 %v1515, %v1554
  %v1556 = vpop.f32.mrf.mxu0
  %v1557 = vpop.f32.mrf.mxu0
  %v1558 = vpop.f32.mrf.mxu0
  %1559 = vdwg.mxu0
  %1560 = vst [vmem:[%s7] sm:$0xff] %v1555
  // Predicated region
  $region30: #{qnetwork_forward.1} parent=0 // pred_check
    _
  $region31: #{qnetwork_forward.1} parent=0 // pred_check_branch
    %1562 = sbr.rel (0) target = $region33
  $region32: #{qnetwork_forward.1} parent=0 // pred_region
    _
  $region33: #{qnetwork_forward.1} parent=0 // pred_fallthru
    _
  // Predicated region
  $region34: #{qnetwork_forward.1} parent=0 // pred_check
    _
  $region35: #{qnetwork_forward.1} parent=0 // pred_check_branch
    %1564 = sbr.rel (0) target = $region37
  $region36: #{qnetwork_forward.1} parent=0 // pred_region
    _
  $region37: #{qnetwork_forward.1} parent=0 // pred_fallthru
    _

</llo_original>
